<compile_context>
chip_gen: v6e
topology: v6e:2x2x1
jax: 0.10.0
libtpu: 0.0.40
codegen_flags: <defaults>
</compile_context>

<pallas_src>
import functools

import jax
import jax.numpy as jnp
from jax.experimental import pallas as pl
from jax.experimental.pallas import tpu as pltpu

_LANES = 128


def _round_up(v, m):
    return ((v + m - 1) // m) * m


def _sum_full_columns(x_ref, n_cols, rows):
    """Sum of columns [0, n_cols*128) of x_ref as an f32 (rows, 128) value.

    Loads 128-lane columns directly from the ref (never materialises the full
    tile) so the live vreg set stays at ~2 column blocks regardless of tile
    width. Long column counts use a fori_loop with manual 8x unrolling so the
    issue rate stays well under the per-column DMA time.
    """
    partial = jnp.zeros((rows, _LANES), jnp.float32)
    if n_cols == 0:
        return partial

    unroll = 8
    n_groups, n_tail = divmod(n_cols, unroll)

    if n_groups > 0:
        def body(g, p):
            base = g * (unroll * _LANES)
            for u in range(unroll):
                start = pl.multiple_of(base + u * _LANES, _LANES)
                p = p + x_ref[:, pl.ds(start, _LANES)].astype(jnp.float32)
            return p

        partial = jax.lax.fori_loop(0, n_groups, body, partial)

    base = n_groups * unroll * _LANES
    for u in range(n_tail):
        start = base + u * _LANES
        partial = partial + x_ref[:, start:start + _LANES].astype(jnp.float32)
    return partial


def _spoc_kernel(x_ref, o_ref, acc_ref, *, rows, hw, tile_hw, num_hw_blocks,
                 inv_hw):
    """Grid = (row_blocks, hw_blocks); the hw axis (last) is the reduction.

    x_ref:   (tile_r, tile_hw) input tile
    o_ref:   (tile_r, 1)       output tile (resident across the hw axis)
    acc_ref: (tile_r, 128)     f32 lane-wise partial-sum accumulator
    """
    if num_hw_blocks == 1:
        # Single full-extent H*W block: reduce directly, no accumulator.
        n_full = hw // _LANES
        tail = hw % _LANES
        total = None
        if n_full > 0:
            partial = _sum_full_columns(x_ref, n_full, rows)
            total = jnp.sum(partial, axis=-1, keepdims=True)
        if tail > 0:
            tail_sum = jnp.sum(
                x_ref[:, n_full * _LANES:hw].astype(jnp.float32),
                axis=-1, keepdims=True)
            total = tail_sum if total is None else total + tail_sum
        o_ref[...] = (total * inv_hw).astype(o_ref.dtype)
        return

    k = pl.program_id(1)
    n_cols = tile_hw // _LANES
    rem = hw - (num_hw_blocks - 1) * tile_hw   # valid elements in last block

    @pl.when(k == 0)
    def _init():
        acc_ref[...] = jnp.zeros_like(acc_ref)

    if rem == tile_hw:
        # H*W divides evenly into blocks: pure vld+vadd hot loop, no masking.
        acc_ref[...] += _sum_full_columns(x_ref, n_cols, rows)
    else:
        # Only the last block overhangs; keep all other blocks mask-free.
        @pl.when(k < num_hw_blocks - 1)
        def _full_block():
            acc_ref[...] += _sum_full_columns(x_ref, n_cols, rows)

        @pl.when(k == num_hw_blocks - 1)
        def _last_block():
            n_full = rem // _LANES
            tail = rem % _LANES
            partial = _sum_full_columns(x_ref, n_full, rows)
            if tail > 0:
                # Only the final partial 128-lane column gets the iota mask.
                col = x_ref[:, n_full * _LANES:(n_full + 1) * _LANES]
                col = col.astype(jnp.float32)
                lane = jax.lax.broadcasted_iota(jnp.int32, (rows, _LANES), 1)
                partial = partial + jnp.where(lane < tail, col, 0.0)
            acc_ref[...] += partial

    @pl.when(k == num_hw_blocks - 1)
    def _finalize():
        # One cross-lane 128->1 reduce per output tile, then scale by 1/(H*W).
        o_ref[...] = (jnp.sum(acc_ref[...], axis=-1, keepdims=True)
                      * inv_hw).astype(o_ref.dtype)


def spoc(x, *, tile_r=None, tile_hw=None, tile_bytes=8 * 1024 * 1024):
    """x: (N, C, H, W) -> (N, C, 1, 1), mean over H, W (== avg_pool2d(x,(H,W)))."""
    n, c, h, w = x.shape
    hw = h * w
    r = n * c
    x_flat = x.reshape(r, hw)
    itemsize = jnp.dtype(x.dtype).itemsize

    # ---- row tiling (parallel axis) -----------------------------------------
    if tile_r is None:
        if r <= 8:
            tile_r = r
        elif r < 256:
            # Ensure >= 2 parallel row blocks so both v7x TensorCores get work.
            tile_r = min(_round_up(pl.cdiv(r, 2), 8), r)
        else:
            # 128 rows keeps the register-resident column partial at ~16 vregs.
            tile_r = 128
    assert tile_r == r or tile_r % 8 == 0, \
        "tile_r must be a multiple of 8 or the full row extent"

    # ---- H*W tiling (reduction axis, kept last & 'arbitrary') ---------------
    if tile_hw is None:
        # dtype-aware: hold the per-buffer VMEM byte budget (not element
        # count) constant -> ~8 MiB/buffer for f32 and bf16 alike.
        target = max(_LANES,
                     (tile_bytes // (tile_r * itemsize)) // _LANES * _LANES)
        tile_hw = hw if hw <= target else target
    assert tile_hw == hw or (tile_hw % _LANES == 0 and tile_hw <= hw), \
        "tile_hw must equal H*W or be a multiple of 128 and <= H*W"

    num_r_blocks = pl.cdiv(r, tile_r)
    num_hw_blocks = pl.cdiv(hw, tile_hw)

    kernel = functools.partial(
        _spoc_kernel,
        rows=tile_r,
        hw=hw,
        tile_hw=tile_hw,
        num_hw_blocks=num_hw_blocks,
        inv_hw=float(1.0 / hw),          # multiply, not divide, in the kernel
    )

    # Cover the double-buffered input + accumulator/output with headroom;
    # stays under v7x's 64 MiB physical VMEM.
    in_bytes = tile_r * tile_hw * itemsize
    vmem_limit = int(min(max(16 << 20, 3 * in_bytes + (2 << 20)), 48 << 20))

    out = pl.pallas_call(
        kernel,
        out_shape=jax.ShapeDtypeStruct((r, 1), x.dtype),
        grid_spec=pltpu.PrefetchScalarGridSpec(
            num_scalar_prefetch=0,
            grid=(num_r_blocks, num_hw_blocks),      # reduction axis last
            in_specs=[
                pl.BlockSpec((tile_r, tile_hw), lambda i, k: (i, k)),
            ],
            out_specs=pl.BlockSpec((tile_r, 1), lambda i, k: (i, 0)),
            scratch_shapes=[pltpu.VMEM((tile_r, _LANES), jnp.float32)],
        ),
        compiler_params=pltpu.CompilerParams(
            dimension_semantics=("parallel", "arbitrary"),
            vmem_limit_bytes=vmem_limit,
        ),
    )(x_flat)

    return out.reshape(n, c, 1, 1)


if __name__ == "__main__":
    key = jax.random.PRNGKey(0)
    k1, k2, k3, k4, k5 = jax.random.split(key, 5)

    def ref_spoc(xx):
        return jnp.mean(xx.astype(jnp.float32), axis=(2, 3),
                        keepdims=True).astype(xx.dtype)

    # 1) Primary small NCHW input (single full-extent, lane-aligned HW block).
    x = jax.random.normal(k1, (2, 4, 16, 16), dtype=jnp.float32)
    y = jax.block_until_ready(spoc(x))
    assert y.shape == (2, 4, 1, 1)
    assert jnp.allclose(y, ref_spoc(x), atol=1e-5, rtol=1e-5)

    # 2) H*W < 128 (non-lane-aligned): tail-only direct path.
    x2 = jax.random.normal(k2, (1, 8, 7, 7), dtype=jnp.float32)
    y2 = jax.block_until_ready(spoc(x2))
    assert jnp.allclose(y2, ref_spoc(x2), atol=1e-5, rtol=1e-5)

    # 3) Tiled reduction + masked remainder block + 2 parallel row blocks.
    x3 = jax.random.normal(k3, (1, 16, 60, 60), dtype=jnp.float32)
    y3 = jax.block_until_ready(spoc(x3, tile_hw=512))
    assert jnp.allclose(y3, ref_spoc(x3), atol=1e-5, rtol=1e-5)

    # 4) Tiled reduction, evenly divided (no masking), bf16 input.
    x4 = jax.random.normal(k4, (2, 8, 16, 16), dtype=jnp.bfloat16)
    y4 = jax.block_until_ready(spoc(x4, tile_hw=128))
    assert jnp.allclose(y4.astype(jnp.float32),
                        ref_spoc(x4).astype(jnp.float32),
                        atol=1e-2, rtol=1e-2)

    # 5) Single block with >8 full columns (exercises the fori column loop)
    #    plus a non-128-aligned tail.
    x5 = jax.random.normal(k5, (1, 8, 40, 40), dtype=jnp.float32)
    y5 = jax.block_until_ready(spoc(x5))
    assert jnp.allclose(y5, ref_spoc(x5), atol=1e-5, rtol=1e-5)

    print("KERNEL_OK")
</pallas_src>

<mosaic_0001>
module attributes {stable_mosaic.version = 11 : i64} {
  func.func @_spoc_kernel(%arg0: i32, %arg1: i32, %arg2: memref<8x256xf32, #tpu.memory_space<vmem>>, %arg3: memref<8x1xf32, #tpu.memory_space<vmem>>, %arg4: memref<8x128xf32, #tpu.memory_space<vmem>>) attributes {dimension_semantics = [#tpu.dimension_semantics<parallel>, #tpu.dimension_semantics<arbitrary>], iteration_bounds = array<i64: 1, 1>, scalar_prefetch = 0 : i64, scratch_operands = 1 : i64, tpu.core_type = #tpu.core_type<tc>, window_params = [{transform_indices = @transform_0, window_bounds = array<i64: 8, 256>}, {transform_indices = @transform_1, window_bounds = array<i64: 8, 1>}]} {
    %cst = arith.constant 0.000000e+00 : f32
    %0 = vector.broadcast %cst : f32 to vector<8x128xf32>
    %c0 = arith.constant 0 : index
    %c0_0 = arith.constant 0 : index
    %1 = vector.load %arg2[%c0, %c0_0] : memref<8x256xf32, #tpu.memory_space<vmem>>, vector<8x128xf32>
    %2 = arith.addf %0, %1 : vector<8x128xf32>
    %c0_1 = arith.constant 0 : index
    %c128 = arith.constant 128 : index
    %3 = vector.load %arg2[%c0_1, %c128] : memref<8x256xf32, #tpu.memory_space<vmem>>, vector<8x128xf32>
    %4 = arith.addf %2, %3 : vector<8x128xf32>
    %cst_2 = arith.constant dense<0.000000e+00> : vector<8xf32>
    %5 = vector.multi_reduction <add>, %4, %cst_2 [1] : vector<8x128xf32> to vector<8xf32>
    %6 = vector.shape_cast %5 : vector<8xf32> to vector<8x1xf32>
    %cst_3 = arith.constant 3.906250e-03 : f32
    %7 = vector.broadcast %cst_3 : f32 to vector<8x1xf32>
    %8 = arith.mulf %6, %7 : vector<8x1xf32>
    %c0_4 = arith.constant 0 : index
    %c0_5 = arith.constant 0 : index
    %9 = vector.load %arg3[%c0_4, %c0_5] : memref<8x1xf32, #tpu.memory_space<vmem>>, vector<8x1xf32>
    tpu.vector_store %arg3[%c0_4, %c0_5], %8 {strides = array<i32>} : memref<8x1xf32, #tpu.memory_space<vmem>>, vector<8x1xf32>,
    return
  }
  func.func @transform_0(%arg0: i32, %arg1: i32) -> (i32, i32) {
    %c0_i32 = arith.constant 0 : i32
    return %arg0, %arg1 : i32, i32
  }
  func.func @transform_1(%arg0: i32, %arg1: i32) -> (i32, i32) {
    %c0_i32 = arith.constant 0 : i32
    %c0_i32_0 = arith.constant 0 : i32
    return %arg0, %c0_i32 : i32, i32
  }
}

</mosaic_0001>

<llo_original>
// kernel: tpu_custom_call.1
$region0: #{tpu_custom_call.1}
  #allocation0 [shape = 'u32[]', space=smem, size = 0x4, offset = 0x4, fixed_abs, tag = 'smem constant byte address 0x4 - core index']
  #allocation1 [shape = 'u32[144,128]{1,0:T(1,128)}', space=vmem, size = 0x12000, scoped, tag = 'internal scratch']
  #allocation2 [shape = 'f32[8,128]{1,0:T(8,128)}', space=vmem, size = 0x1000, scoped, tag = 'scratch operand']
  %s0 = inlined_call_operand.hbm [shape: f32[8,256], index: 0, kind: input, shape index: {}]
  %s1 = inlined_call_operand.vmem [shape: f32[8,1], index: 1, kind: output, shape index: {}]
  %s2 = sld [smem:[#allocation0]]
  $region18: #{tpu_custom_call.1} parent=0
    _
  %s4 = ssub.s32 1, %s2
  %s5 = scalar_select 0, %s4, %s2
  $region1: #{tpu_custom_call.1} parent=0
    #allocation3 [shape = 'u8[8192]{0}', space=vmem, size = 0x2000, scoped, tag = 'input window, operand 0, single buffered']
    #allocation4 [shape = 's32[1]{0}', space=sflag, size = 0x4, scoped, tag = 'scoped memory for tpu_custom_call.1']
    %6 = vsyncpa [#allocation4], 0
    // Predicated region
    $region2: #{tpu_custom_call.1} parent=1 // pred_check
      _
    $region3: #{tpu_custom_call.1} parent=1 // pred_check_branch
      %8 = sbr.rel (0) target = $region5
    $region4: #{tpu_custom_call.1} parent=1 // pred_region
      %s10 = ssub.s32 256, 256
      %11 = vsyncadd [#allocation4], %s10
      %s13 = sshll.u32 [#allocation3], 4
      %s14 = int_to_ptr.vmem [resolvable:$true] %s13
      %16 = dma.hbm_to_vmem [thread:$0]  %s0, 256, %s14, [#allocation4]
    $region5: #{tpu_custom_call.1} parent=1 // pred_fallthru
      _
    // Predicated region
    $region6: #{tpu_custom_call.1} parent=1 // pred_check
      _
    $region7: #{tpu_custom_call.1} parent=1 // pred_check_branch
      %18 = sbr.rel (0) target = $region9
    $region8: #{tpu_custom_call.1} parent=1 // pred_region
      %19 = dma.done [#allocation4], 256
    $region9: #{tpu_custom_call.1} parent=1 // pred_fallthru
      _
    %v20 = vld [vmem:[#allocation3] sm:$0xff]
    %v21 = vadd.f32 %v20, 0.0
    %v22 = vld [vmem:[#allocation3 + $0x8] sm:$0xff]
    %v23 = vadd.f32 %v21, %v22
    %24 = vadd.xlane.f32.xlu0 %v23
    %v25 = vpop.xlane.xlu0 %24
    %v26 = vmul.f32 %v25, 0.00390625
    %vm27 = vcmask 7168
    %28 = vst.msk [vmem:[%s1] sm:$0xff] %vm27, %v26
    // Predicated region
    $region10: #{tpu_custom_call.1} parent=1 // pred_check
      _
    $region11: #{tpu_custom_call.1} parent=1 // pred_check_branch
      %30 = sbr.rel (0) target = $region13
    $region12: #{tpu_custom_call.1} parent=1 // pred_region
      _
    $region13: #{tpu_custom_call.1} parent=1 // pred_fallthru
      _
    // Predicated region
    $region14: #{tpu_custom_call.1} parent=1 // pred_check
      _
    $region15: #{tpu_custom_call.1} parent=1 // pred_check_branch
      %32 = sbr.rel (0) target = $region17
    $region16: #{tpu_custom_call.1} parent=1 // pred_region
      _
    $region17: #{tpu_custom_call.1} parent=1 // pred_fallthru
      _
    %33 = vsyncpa [#allocation4], 1

</llo_original>
